<compile_context>
chip_gen: v5e
topology: v5e:2x2
jax: 0.10.0
libtpu: 0.0.40
codegen_flags: <defaults>
</compile_context>

<pallas_src>
import functools

import jax
import jax.numpy as jnp
from jax.experimental import pallas as pl
from jax.experimental.pallas import tpu as pltpu


LANE = 128  # vreg lane width: pad all minor dims to this for lane-dense ops.


def _round_up(v, m):
    return ((v + m - 1) // m) * m


def _pad2(a, rows, cols):
    return jnp.pad(a, ((0, rows - a.shape[0]), (0, cols - a.shape[1])))


# ----------------------------------------------------------------------------
# Kernel: one GINConv (aggregation + 2-layer MLP), row-tiled over nodes.
# ----------------------------------------------------------------------------
def ginconv_kernel(a_ref, x_ref, w_ref, b_ref, o_ref, *,
                   relu_out, log_softmax_out, out_c):
    """One GINConv row block.

    a_ref : (TM, n_pad) bf16 block of A' = A + (1+eps)*I  (exact small ints)
    x_ref : (n_pad, F) f32 full feature matrix (grid-invariant block)
    w_ref : (2, F, F) f32 stacked MLP weights   [lin1, lin2]
    b_ref : (2, 1, F) f32 stacked MLP biases    [lin1, lin2]
    o_ref : (TM, F) f32 output block
    """
    # Cast only this row block to f32 (TM x n_pad slab, not the full N^2).
    a = a_ref[...].astype(jnp.float32)

    # Aggregation (self-loop already folded into A'):  h = A' @ x
    h = jnp.dot(a, x_ref[...], preferred_element_type=jnp.float32)

    # MLP: Linear -> ReLU -> Linear  (padded weight rows/cols are zero, so
    # padded feature lanes stay zero through the MLP).
    z = jnp.dot(h, w_ref[0], preferred_element_type=jnp.float32) + b_ref[0]
    z = jnp.maximum(z, 0.0)
    out = jnp.dot(z, w_ref[1], preferred_element_type=jnp.float32) + b_ref[1]

    if relu_out:                      # F.relu between conv1 and conv2
        out = jnp.maximum(out, 0.0)

    if log_softmax_out:               # masked log_softmax over real columns
        col = jax.lax.broadcasted_iota(jnp.int32, out.shape, 1)
        out = jnp.where(col < out_c, out, -jnp.inf)
        m = jnp.max(out, axis=1, keepdims=True)
        shifted = out - m
        lse = jnp.log(jnp.sum(jnp.exp(shifted), axis=1, keepdims=True))
        out = shifted - lse

    o_ref[...] = out


# ----------------------------------------------------------------------------
# Tiling / VMEM sizing helpers.
# ----------------------------------------------------------------------------
def _vmem_need(tm, n_pad, f_pad):
    return (2 * tm * n_pad * 2          # A' block, bf16, double-buffered
            + tm * n_pad * 4            # in-kernel f32 cast of the A' block
            + 2 * n_pad * f_pad * 4     # x, grid-invariant (conservative x2)
            + 2 * 2 * f_pad * f_pad * 4 # weight stack (x2 buffers)
            + 2 * 2 * f_pad * 4         # bias stack
            + 2 * tm * f_pad * 4        # output block, double-buffered
            + 4 * tm * f_pad * 4)       # h / z / out temporaries headroom


def _choose_tile(n_pad, f_pad):
    """Largest 128-multiple row block (<=512) dividing n_pad that fits a
    48 MiB working set (headroom on v7x's 64 MiB VMEM; trivially fits
    v5e/v6e's 128 MiB)."""
    budget = 48 * 1024 * 1024
    tm = 128
    for cand in (512, 256, 128):
        if n_pad % cand == 0 and _vmem_need(cand, n_pad, f_pad) <= budget:
            tm = cand
            break
    vmem_limit = min(max(_vmem_need(tm, n_pad, f_pad) + (4 << 20), 16 << 20),
                     64 << 20)
    return tm, vmem_limit


def _cost_estimate(n_pad, f_pad, with_softmax):
    flops = 2 * n_pad * n_pad * f_pad + 2 * 2 * n_pad * f_pad * f_pad
    transcendentals = n_pad * f_pad if with_softmax else 0   # exp in softmax
    bytes_accessed = (n_pad * n_pad * 2          # A' bf16
                      + 2 * n_pad * f_pad * 4    # x in, out
                      + 2 * f_pad * f_pad * 4    # weights
                      + 2 * f_pad * 4)           # biases
    return pl.CostEstimate(flops=flops, transcendentals=transcendentals,
                           bytes_accessed=bytes_accessed)


def _ginconv_call(a, x_in, w_stack, b_stack, *, tm, vmem_limit,
                  relu_out, log_softmax_out, out_c):
    n_pad = a.shape[0]
    f_pad = x_in.shape[1]
    kernel = functools.partial(ginconv_kernel, relu_out=relu_out,
                               log_softmax_out=log_softmax_out, out_c=out_c)
    return pl.pallas_call(
        kernel,
        out_shape=jax.ShapeDtypeStruct((n_pad, f_pad), jnp.float32),
        grid=(n_pad // tm,),
        in_specs=[
            pl.BlockSpec((tm, n_pad), lambda i: (i, 0)),           # A' row block
            pl.BlockSpec((n_pad, f_pad), lambda i: (0, 0)),        # x (invariant)
            pl.BlockSpec((2, f_pad, f_pad), lambda i: (0, 0, 0)),  # weights
            pl.BlockSpec((2, 1, f_pad), lambda i: (0, 0, 0)),      # biases
        ],
        out_specs=pl.BlockSpec((tm, f_pad), lambda i: (i, 0)),
        compiler_params=pltpu.CompilerParams(
            dimension_semantics=("parallel",),     # dual-TC split on v7x
            vmem_limit_bytes=vmem_limit),
        cost_estimate=_cost_estimate(n_pad, f_pad, log_softmax_out),
    )(a, x_in, w_stack, b_stack)


# ----------------------------------------------------------------------------
# Full forward.
# ----------------------------------------------------------------------------
def gin_forward(x, edge_index, params, *, eps=0.0):
    """Full GIN forward. x: (N, in_channels) f32, edge_index: (2, E) int32."""
    n, in_c = x.shape
    hid = params["w1a"].shape[1]
    out_c = params["w2b"].shape[1]

    n_pad = _round_up(n, LANE)
    # Common feature padding so both layers share one lane-dense width and the
    # per-layer weights/biases can be stacked into single operands.
    f_pad = max(_round_up(in_c, LANE), _round_up(hid, LANE),
                _round_up(out_c, LANE))
    tm, vmem_limit = _choose_tile(n_pad, f_pad)

    # Dense adjacency with the GIN self-loop folded in, built without
    # materializing eye(n_pad):
    #   A'[dst, src] = #edges(src -> dst),  A'[i, i] += (1 + eps)  (real nodes)
    # Stored in bf16 (small exact integers -> lossless, halves HBM bytes).
    a = jnp.zeros((n_pad, n_pad), jnp.float32)
    a = a.at[edge_index[1], edge_index[0]].add(1.0)
    diag = jnp.arange(n, dtype=jnp.int32)
    a = a.at[diag, diag].add(1.0 + eps)
    a = a.astype(jnp.bfloat16)

    # Zero-pad activations; stack each layer's weights/biases into one array.
    xp = _pad2(x, n_pad, f_pad)
    w1 = jnp.stack([_pad2(params["w1a"], f_pad, f_pad),
                    _pad2(params["w1b"], f_pad, f_pad)])
    b1 = jnp.stack([_pad2(params["b1a"], 1, f_pad),
                    _pad2(params["b1b"], 1, f_pad)])
    w2 = jnp.stack([_pad2(params["w2a"], f_pad, f_pad),
                    _pad2(params["w2b"], f_pad, f_pad)])
    b2 = jnp.stack([_pad2(params["b2a"], 1, f_pad),
                    _pad2(params["b2b"], 1, f_pad)])

    # conv1 + ReLU (row-tiled, parallel over node blocks)
    x1 = _ginconv_call(a, xp, w1, b1, tm=tm, vmem_limit=vmem_limit,
                       relu_out=True, log_softmax_out=False, out_c=hid)
    # conv2 + log_softmax
    out = _ginconv_call(a, x1, w2, b2, tm=tm, vmem_limit=vmem_limit,
                        relu_out=False, log_softmax_out=True, out_c=out_c)

    # Strip node / feature padding.
    return out[:n, :out_c]


# ----------------------------------------------------------------------------
# Parameter init (matches torch.nn.Linear) and pure-JAX reference.
# ----------------------------------------------------------------------------
def _linear_init(key, fan_in, fan_out):
    kw, kb = jax.random.split(key)
    bound = 1.0 / jnp.sqrt(float(fan_in))
    w = jax.random.uniform(kw, (fan_in, fan_out), jnp.float32, -bound, bound)
    b = jax.random.uniform(kb, (1, fan_out), jnp.float32, -bound, bound)
    return w, b


def make_params(key, in_channels, hidden_channels, out_channels):
    k1, k2, k3, k4 = jax.random.split(key, 4)
    w1a, b1a = _linear_init(k1, in_channels, hidden_channels)
    w1b, b1b = _linear_init(k2, hidden_channels, hidden_channels)
    w2a, b2a = _linear_init(k3, hidden_channels, hidden_channels)
    w2b, b2b = _linear_init(k4, hidden_channels, out_channels)
    return dict(w1a=w1a, b1a=b1a, w1b=w1b, b1b=b1b,
                w2a=w2a, b2a=b2a, w2b=w2b, b2b=b2b)


def gin_reference(x, edge_index, params):
    """Pure-JAX reference (matches the PyTorch module, eps=0)."""
    n = x.shape[0]
    a = jnp.zeros((n, n), jnp.float32).at[edge_index[1], edge_index[0]].add(1.0)

    def conv(a, x, wA, bA, wB, bB):
        h = x + a @ x                      # (1 + eps) * x + agg, eps = 0
        z = jnp.maximum(h @ wA + bA, 0.0)
        return z @ wB + bB

    x1 = jnp.maximum(conv(a, x, params["w1a"], params["b1a"],
                          params["w1b"], params["b1b"]), 0.0)
    x2 = conv(a, x1, params["w2a"], params["b2a"],
              params["w2b"], params["b2b"])
    return jax.nn.log_softmax(x2, axis=1)


if __name__ == "__main__":
    key = jax.random.PRNGKey(0)
    k_x, k_e, k_p = jax.random.split(key, 3)

    N = 8              # number of graph nodes
    E = 16             # number of edges
    IN_C, HID, OUT_C = 4, 32, 4

    x = jax.random.normal(k_x, (N, IN_C), jnp.float32)
    edge_index = jax.random.randint(k_e, (2, E), 0, N, jnp.int32)
    params = make_params(k_p, IN_C, HID, OUT_C)

    out = gin_forward(x, edge_index, params)
    out = jax.block_until_ready(out)

    ref = gin_reference(x, edge_index, params)
    assert out.shape == (N, OUT_C)
    assert jnp.allclose(out, ref, atol=1e-5, rtol=1e-5), "mismatch vs JAX reference"

    print("KERNEL_OK")
</pallas_src>

<mosaic_0001>
module attributes {stable_mosaic.version = 11 : i64} {
  func.func @ginconv_kernel(%arg0: i32, %arg1: memref<128x128xbf16, #tpu.memory_space<vmem>>, %arg2: memref<128x128xf32, #tpu.memory_space<vmem>>, %arg3: memref<2x128x128xf32, #tpu.memory_space<vmem>>, %arg4: memref<2x1x128xf32, #tpu.memory_space<vmem>>, %arg5: memref<128x128xf32, #tpu.memory_space<vmem>>) attributes {dimension_semantics = [#tpu.dimension_semantics<parallel>], iteration_bounds = array<i64: 1>, scalar_prefetch = 0 : i64, scratch_operands = 0 : i64, tpu.core_type = #tpu.core_type<tc>, window_params = [{transform_indices = @transform_0, window_bounds = array<i64: 128, 128>}, {pipeline_mode = #tpu.pipeline_mode<synchronous>, transform_indices = @transform_1, window_bounds = array<i64: 128, 128>}, {pipeline_mode = #tpu.pipeline_mode<synchronous>, transform_indices = @transform_2, window_bounds = array<i64: 2, 128, 128>}, {pipeline_mode = #tpu.pipeline_mode<synchronous>, transform_indices = @transform_3, window_bounds = array<i64: 2, 1, 128>}, {transform_indices = @transform_4, window_bounds = array<i64: 128, 128>}]} {
    %c0 = arith.constant 0 : index
    %c0_0 = arith.constant 0 : index
    %0 = vector.load %arg1[%c0, %c0_0] : memref<128x128xbf16, #tpu.memory_space<vmem>>, vector<128x128xbf16>
    %1 = arith.extf %0 : vector<128x128xbf16> to vector<128x128xf32>
    %c0_1 = arith.constant 0 : index
    %c0_2 = arith.constant 0 : index
    %2 = vector.load %arg2[%c0_1, %c0_2] : memref<128x128xf32, #tpu.memory_space<vmem>>, vector<128x128xf32>
    %cst = arith.constant dense<0.000000e+00> : vector<128x128xf32>
    %3 = tpu.matmul %1, %2, %cst {dimension_numbers = #tpu.dot_dimension_numbers<[1], [0], [0], [1], [0, 0, 1, 1], [], []>} : vector<128x128xf32>, vector<128x128xf32>, vector<128x128xf32> -> vector<128x128xf32>
    %c0_3 = arith.constant 0 : index
    %c0_4 = arith.constant 0 : index
    %c0_5 = arith.constant 0 : index
    %4 = vector.load %arg3[%c0_3, %c0_4, %c0_5] : memref<2x128x128xf32, #tpu.memory_space<vmem>>, vector<1x128x128xf32>
    %5 = vector.shape_cast %4 : vector<1x128x128xf32> to vector<128x128xf32>
    %cst_6 = arith.constant dense<0.000000e+00> : vector<128x128xf32>
    %6 = tpu.matmul %3, %5, %cst_6 {dimension_numbers = #tpu.dot_dimension_numbers<[1], [0], [0], [1], [0, 0, 1, 1], [], []>} : vector<128x128xf32>, vector<128x128xf32>, vector<128x128xf32> -> vector<128x128xf32>
    %c0_7 = arith.constant 0 : index
    %c0_8 = arith.constant 0 : index
    %c0_9 = arith.constant 0 : index
    %7 = vector.load %arg4[%c0_7, %c0_8, %c0_9] : memref<2x1x128xf32, #tpu.memory_space<vmem>>, vector<1x1x128xf32>
    %8 = vector.shape_cast %7 : vector<1x1x128xf32> to vector<1x128xf32>
    %9 = vector.broadcast %8 : vector<1x128xf32> to vector<128x128xf32>
    %10 = arith.addf %6, %9 : vector<128x128xf32>
    %cst_10 = arith.constant 0.000000e+00 : f32
    %11 = vector.broadcast %cst_10 : f32 to vector<128x128xf32>
    %12 = arith.maximumf %10, %11 : vector<128x128xf32>
    %c1 = arith.constant 1 : index
    %c0_11 = arith.constant 0 : index
    %c0_12 = arith.constant 0 : index
    %13 = vector.load %arg3[%c1, %c0_11, %c0_12] : memref<2x128x128xf32, #tpu.memory_space<vmem>>, vector<1x128x128xf32>
    %14 = vector.shape_cast %13 : vector<1x128x128xf32> to vector<128x128xf32>
    %cst_13 = arith.constant dense<0.000000e+00> : vector<128x128xf32>
    %15 = tpu.matmul %12, %14, %cst_13 {dimension_numbers = #tpu.dot_dimension_numbers<[1], [0], [0], [1], [0, 0, 1, 1], [], []>} : vector<128x128xf32>, vector<128x128xf32>, vector<128x128xf32> -> vector<128x128xf32>
    %c1_14 = arith.constant 1 : index
    %c0_15 = arith.constant 0 : index
    %c0_16 = arith.constant 0 : index
    %16 = vector.load %arg4[%c1_14, %c0_15, %c0_16] : memref<2x1x128xf32, #tpu.memory_space<vmem>>, vector<1x1x128xf32>
    %17 = vector.shape_cast %16 : vector<1x1x128xf32> to vector<1x128xf32>
    %18 = vector.broadcast %17 : vector<1x128xf32> to vector<128x128xf32>
    %19 = arith.addf %15, %18 : vector<128x128xf32>
    %cst_17 = arith.constant 0.000000e+00 : f32
    %20 = vector.broadcast %cst_17 : f32 to vector<128x128xf32>
    %21 = arith.maximumf %19, %20 : vector<128x128xf32>
    %c0_18 = arith.constant 0 : index
    %c0_19 = arith.constant 0 : index
    %22 = vector.load %arg5[%c0_18, %c0_19] : memref<128x128xf32, #tpu.memory_space<vmem>>, vector<128x128xf32>
    tpu.vector_store %arg5[%c0_18, %c0_19], %21 {strides = array<i32>} : memref<128x128xf32, #tpu.memory_space<vmem>>, vector<128x128xf32>,
    return
  }
  func.func @transform_0(%arg0: i32) -> (i32, i32) {
    %c0_i32 = arith.constant 0 : i32
    %c0_i32_0 = arith.constant 0 : i32
    return %arg0, %c0_i32 : i32, i32
  }
  func.func @transform_1(%arg0: i32) -> (i32, i32) {
    %c0_i32 = arith.constant 0 : i32
    %c0_i32_0 = arith.constant 0 : i32
    %c0_i32_1 = arith.constant 0 : i32
    return %c0_i32, %c0_i32_0 : i32, i32
  }
  func.func @transform_2(%arg0: i32) -> (i32, i32, i32) {
    %c0_i32 = arith.constant 0 : i32
    %c0_i32_0 = arith.constant 0 : i32
    %c0_i32_1 = arith.constant 0 : i32
    %c0_i32_2 = arith.constant 0 : i32
    return %c0_i32, %c0_i32_0, %c0_i32_1 : i32, i32, i32
  }
  func.func @transform_3(%arg0: i32) -> (i32, i32, i32) {
    %c0_i32 = arith.constant 0 : i32
    %c0_i32_0 = arith.constant 0 : i32
    %c0_i32_1 = arith.constant 0 : i32
    %c0_i32_2 = arith.constant 0 : i32
    return %c0_i32, %c0_i32_0, %c0_i32_1 : i32, i32, i32
  }
  func.func @transform_4(%arg0: i32) -> (i32, i32) {
    %c0_i32 = arith.constant 0 : i32
    %c0_i32_0 = arith.constant 0 : i32
    return %arg0, %c0_i32 : i32, i32
  }
}

</mosaic_0001>

<llo_original>
// kernel: tpu_custom_call.1
$region0: #{tpu_custom_call.1}
  #allocation0 [shape = 'u32[]', space=smem, size = 0x4, offset = 0x4, fixed_abs, tag = 'smem constant byte address 0x4 - core index']
  #allocation1 [shape = 'u32[72,128]{1,0:T(1,128)}', space=vmem, size = 0x9000, scoped, tag = 'internal scratch']
  %s0 = inlined_call_operand.hbm [shape: bf16[128,128], index: 0, kind: input, shape index: {}]
  %s1 = inlined_call_operand.hbm [shape: f32[128,128], index: 1, kind: input, shape index: {}]
  %s2 = inlined_call_operand.hbm [shape: f32[2,128,128], index: 2, kind: input, shape index: {}]
  %s3 = inlined_call_operand.vmem [shape: f32[2,1,128], index: 3, kind: input, shape index: {}]
  %s4 = inlined_call_operand.hbm [shape: f32[128,128], index: 4, kind: output, shape index: {}]
  %s5 = sld [smem:[#allocation0]]
  $region38: #{tpu_custom_call.1} parent=0
    _
  %s7 = ssub.s32 1, %s5
  %s8 = scalar_select 0, %s7, %s5
  $region1: #{tpu_custom_call.1} parent=0
    #allocation2 [shape = 'u8[32768]{0}', space=vmem, size = 0x8000, scoped, tag = 'input window, operand 0, single buffered']
    #allocation3 [shape = 's32[1]{0}', space=sflag, size = 0x4, scoped, tag = 'scoped memory for tpu_custom_call.1']
    #allocation4 [shape = 's32[1]{0}', space=sflag, size = 0x4, scoped, tag = 'scoped memory for tpu_custom_call.1']
    #allocation5 [shape = 'u8[65536]{0}', space=vmem, size = 0x10000, scoped, tag = 'input window, operand 1, single buffered']
    #allocation6 [shape = 's32[1]{0}', space=sflag, size = 0x4, scoped, tag = 'scoped memory for tpu_custom_call.1']
    #allocation7 [shape = 'u8[131072]{0}', space=vmem, size = 0x20000, scoped, tag = 'input window, operand 2, single buffered']
    #allocation8 [shape = 'u8[65536]{0}', space=vmem, size = 0x10000, scoped, tag = 'output window, operand 0, single buffered']
    %9 = vsyncpa [#allocation3], 0
    %10 = vsyncpa [#allocation6], 0
    %11 = vsyncpa [#allocation4], 0
    // Predicated region
    $region2: #{tpu_custom_call.1} parent=1 // pred_check
      _
    $region3: #{tpu_custom_call.1} parent=1 // pred_check_branch
      %13 = sbr.rel (0) target = $region5
    $region4: #{tpu_custom_call.1} parent=1 // pred_region
      %15 = vsyncadd [#allocation3], 0
      %s16 = sshll.u32 %s0, 4
      %s17 = int_to_ptr.hbm [resolvable:$true] %s16
      %s18 = sshll.u32 [#allocation2], 4
      %s19 = int_to_ptr.vmem [resolvable:$true] %s18
      %24 = dma.hbm_to_vmem [thread:$0]  %s17, 1024, %s19, [#allocation3], 64, 64, 4
    $region5: #{tpu_custom_call.1} parent=1 // pred_fallthru
      _
    // Predicated region
    $region6: #{tpu_custom_call.1} parent=1 // pred_check
      _
    $region7: #{tpu_custom_call.1} parent=1 // pred_check_branch
      %26 = sbr.rel (0) target = $region9
    $region8: #{tpu_custom_call.1} parent=1 // pred_region
      %28 = vsyncadd [#allocation6], 0
      %s29 = sshll.u32 %s1, 4
      %s30 = int_to_ptr.hbm [resolvable:$true] %s29
      %s31 = sshll.u32 [#allocation5], 4
      %s32 = int_to_ptr.vmem [resolvable:$true] %s31
      %37 = dma.hbm_to_vmem [thread:$0]  %s30, 2048, %s32, [#allocation6], 128, 128, 8
    $region9: #{tpu_custom_call.1} parent=1 // pred_fallthru
      _
    // Predicated region
    $region10: #{tpu_custom_call.1} parent=1 // pred_check
      _
    $region11: #{tpu_custom_call.1} parent=1 // pred_check_branch
      %39 = sbr.rel (0) target = $region13
    $region12: #{tpu_custom_call.1} parent=1 // pred_region
      %41 = vsyncadd [#allocation6], 0
      %s42 = sshll.u32 %s2, 4
      %s43 = int_to_ptr.hbm [resolvable:$true] %s42
      %s44 = sshll.u32 [#allocation7], 4
      %s45 = int_to_ptr.vmem [resolvable:$true] %s44
      %50 = dma.hbm_to_vmem [thread:$0]  %s43, 4096, %s45, [#allocation6], 128, 128, 8
    $region13: #{tpu_custom_call.1} parent=1 // pred_fallthru
      _
    // Predicated region
    $region14: #{tpu_custom_call.1} parent=1 // pred_check
      _
    $region15: #{tpu_custom_call.1} parent=1 // pred_check_branch
      %52 = sbr.rel (0) target = $region17
    $region16: #{tpu_custom_call.1} parent=1 // pred_region
      _
    $region17: #{tpu_custom_call.1} parent=1 // pred_fallthru
      _
    // Predicated region
    $region18: #{tpu_custom_call.1} parent=1 // pred_check
      _
    $region19: #{tpu_custom_call.1} parent=1 // pred_check_branch
      %54 = sbr.rel (0) target = $region21
    $region20: #{tpu_custom_call.1} parent=1 // pred_region
      %56 = dma.done [#allocation3], 1024
    $region21: #{tpu_custom_call.1} parent=1 // pred_fallthru
      _
    // Predicated region
    $region22: #{tpu_custom_call.1} parent=1 // pred_check
      _
    $region23: #{tpu_custom_call.1} parent=1 // pred_check_branch
      %58 = sbr.rel (0) target = $region25
    $region24: #{tpu_custom_call.1} parent=1 // pred_region
      %60 = dma.done [#allocation6], 2048
    $region25: #{tpu_custom_call.1} parent=1 // pred_fallthru
      _
    // Predicated region
    $region26: #{tpu_custom_call.1} parent=1 // pred_check
      _
    $region27: #{tpu_custom_call.1} parent=1 // pred_check_branch
      %62 = sbr.rel (0) target = $region29
    $region28: #{tpu_custom_call.1} parent=1 // pred_region
      %64 = dma.done [#allocation6], 4096
    $region29: #{tpu_custom_call.1} parent=1 // pred_fallthru
      _
    %v65 = vld [vmem:[#allocation2] sm:$0xf]
    %v66 = vld [vmem:[#allocation2 + $0x4] sm:$0xf]
    %v67 = vld [vmem:[#allocation2 + $0x8] sm:$0xf]
    %v68 = vld [vmem:[#allocation2 + $0xc] sm:$0xf]
    %v69 = vld [vmem:[#allocation2 + $0x10] sm:$0xf]
    %v70 = vld [vmem:[#allocation2 + $0x14] sm:$0xf]
    %v71 = vld [vmem:[#allocation2 + $0x18] sm:$0xf]
    %v72 = vld [vmem:[#allocation2 + $0x1c] sm:$0xf]
    %v73 = vld [vmem:[#allocation2 + $0x20] sm:$0xf]
    %v74 = vld [vmem:[#allocation2 + $0x24] sm:$0xf]
    %v75 = vld [vmem:[#allocation2 + $0x28] sm:$0xf]
    %v76 = vld [vmem:[#allocation2 + $0x2c] sm:$0xf]
    %v77 = vld [vmem:[#allocation2 + $0x30] sm:$0xf]
    %v78 = vld [vmem:[#allocation2 + $0x34] sm:$0xf]
    %v79 = vld [vmem:[#allocation2 + $0x38] sm:$0xf]
    %v80 = vld [vmem:[#allocation2 + $0x3c] sm:$0xf]
    %v81 = vunpack.c.l.bf16 %v65
    %v82 = vunpack.c.l.bf16 %v66
    %v83 = vunpack.c.l.bf16 %v67
    %v84 = vunpack.c.l.bf16 %v68
    %v85 = vunpack.c.l.bf16 %v69
    %v86 = vunpack.c.l.bf16 %v70
    %v87 = vunpack.c.l.bf16 %v71
    %v88 = vunpack.c.l.bf16 %v72
    %v89 = vunpack.c.l.bf16 %v73
    %v90 = vunpack.c.l.bf16 %v74
    %v91 = vunpack.c.l.bf16 %v75
    %v92 = vunpack.c.l.bf16 %v76
    %v93 = vunpack.c.l.bf16 %v77
    %v94 = vunpack.c.l.bf16 %v78
    %v95 = vunpack.c.l.bf16 %v79
    %v96 = vunpack.c.l.bf16 %v80
    %v97 = vld [vmem:[#allocation5] sm:$0xff]
    %v98 = vld [vmem:[#allocation5 + $0x8] sm:$0xff]
    %v99 = vld [vmem:[#allocation5 + $0x10] sm:$0xff]
    %v100 = vld [vmem:[#allocation5 + $0x18] sm:$0xff]
    %v101 = vld [vmem:[#allocation5 + $0x20] sm:$0xff]
    %v102 = vld [vmem:[#allocation5 + $0x28] sm:$0xff]
    %v103 = vld [vmem:[#allocation5 + $0x30] sm:$0xff]
    %v104 = vld [vmem:[#allocation5 + $0x38] sm:$0xff]
    %v105 = vld [vmem:[#allocation5 + $0x40] sm:$0xff]
    %v106 = vld [vmem:[#allocation5 + $0x48] sm:$0xff]
    %v107 = vld [vmem:[#allocation5 + $0x50] sm:$0xff]
    %v108 = vld [vmem:[#allocation5 + $0x58] sm:$0xff]
    %v109 = vld [vmem:[#allocation5 + $0x60] sm:$0xff]
    %v110 = vld [vmem:[#allocation5 + $0x68] sm:$0xff]
    %v111 = vld [vmem:[#allocation5 + $0x70] sm:$0xff]
    %v112 = vld [vmem:[#allocation5 + $0x78] sm:$0xff]
    %113 = vmatpush.msra.mxu0 %v112
    %114 = vmatpush.msra.mxu0 %v111
    %115 = vmatpush.msra.mxu0 %v110
    %116 = vmatpush.msra.mxu0 %v109
    %117 = vmatpush.msra.mxu0 %v108
    %118 = vmatpush.msra.mxu0 %v107
    %119 = vmatpush.msra.mxu0 %v106
    %120 = vmatpush.msra.mxu0 %v105
    %121 = vmatpush.msra.mxu0 %v104
    %122 = vmatpush.msra.mxu0 %v103
    %123 = vmatpush.msra.mxu0 %v102
    %124 = vmatpush.msra.mxu0 %v101
    %125 = vmatpush.msra.mxu0 %v100
    %126 = vmatpush.msra.mxu0 %v99
    %127 = vmatpush.msra.mxu0 %v98
    %128 = vmatpush.msra.mxu0 %v97
    %129 = vmatmul.f32.gmra.mxu0 %v81
    %v130 = vpop.f32.mrf.mxu0
    %v131 = vadd.f32 0.0, %v130
    %132 = vmatmul.f32.gmra.mxu0 %v82
    %v133 = vpop.f32.mrf.mxu0
    %v134 = vadd.f32 0.0, %v133
    %135 = vmatmul.f32.gmra.mxu0 %v83
    %v136 = vpop.f32.mrf.mxu0
    %v137 = vadd.f32 0.0, %v136
    %138 = vmatmul.f32.gmra.mxu0 %v84
    %v139 = vpop.f32.mrf.mxu0
    %v140 = vadd.f32 0.0, %v139
    %141 = vmatmul.f32.gmra.mxu0 %v85
    %v142 = vpop.f32.mrf.mxu0
    %v143 = vadd.f32 0.0, %v142
    %144 = vmatmul.f32.gmra.mxu0 %v86
    %v145 = vpop.f32.mrf.mxu0
    %v146 = vadd.f32 0.0, %v145
    %147 = vmatmul.f32.gmra.mxu0 %v87
    %v148 = vpop.f32.mrf.mxu0
    %v149 = vadd.f32 0.0, %v148
    %150 = vmatmul.f32.gmra.mxu0 %v88
    %v151 = vpop.f32.mrf.mxu0
    %v152 = vadd.f32 0.0, %v151
    %153 = vmatmul.f32.gmra.mxu0 %v89
    %v154 = vpop.f32.mrf.mxu0
    %v155 = vadd.f32 0.0, %v154
    %156 = vmatmul.f32.gmra.mxu0 %v90
    %v157 = vpop.f32.mrf.mxu0
    %v158 = vadd.f32 0.0, %v157
    %159 = vmatmul.f32.gmra.mxu0 %v91
    %v160 = vpop.f32.mrf.mxu0
    %v161 = vadd.f32 0.0, %v160
    %162 = vmatmul.f32.gmra.mxu0 %v92
    %v163 = vpop.f32.mrf.mxu0
    %v164 = vadd.f32 0.0, %v163
    %165 = vmatmul.f32.gmra.mxu0 %v93
    %v166 = vpop.f32.mrf.mxu0
    %v167 = vadd.f32 0.0, %v166
    %168 = vmatmul.f32.gmra.mxu0 %v94
    %v169 = vpop.f32.mrf.mxu0
    %v170 = vadd.f32 0.0, %v169
    %171 = vmatmul.f32.gmra.mxu0 %v95
    %v172 = vpop.f32.mrf.mxu0
    %v173 = vadd.f32 0.0, %v172
    %174 = vmatmul.f32.gmra.mxu0 %v96
    %v175 = vpop.f32.mrf.mxu0
    %v176 = vadd.f32 0.0, %v175
    %177 = vdwg.mxu0
    %v178 = vld [vmem:[#allocation7] sm:$0xff]
    %v179 = vld [vmem:[#allocation7 + $0x8] sm:$0xff]
    %v180 = vld [vmem:[#allocation7 + $0x10] sm:$0xff]
    %v181 = vld [vmem:[#allocation7 + $0x18] sm:$0xff]
    %v182 = vld [vmem:[#allocation7 + $0x20] sm:$0xff]
    %v183 = vld [vmem:[#allocation7 + $0x28] sm:$0xff]
    %v184 = vld [vmem:[#allocation7 + $0x30] sm:$0xff]
    %v185 = vld [vmem:[#allocation7 + $0x38] sm:$0xff]
    %v186 = vld [vmem:[#allocation7 + $0x40] sm:$0xff]
    %v187 = vld [vmem:[#allocation7 + $0x48] sm:$0xff]
    %v188 = vld [vmem:[#allocation7 + $0x50] sm:$0xff]
    %v189 = vld [vmem:[#allocation7 + $0x58] sm:$0xff]
    %v190 = vld [vmem:[#allocation7 + $0x60] sm:$0xff]
    %v191 = vld [vmem:[#allocation7 + $0x68] sm:$0xff]
    %v192 = vld [vmem:[#allocation7 + $0x70] sm:$0xff]
    %v193 = vld [vmem:[#allocation7 + $0x78] sm:$0xff]
    %v194 = vld [vmem:[%s3] sm:$0x1]
    %v196 = vperm.slane %v194, 0
    %198 = vmatpush.msra.mxu0 %v193
    %199 = vmatpush.msra.mxu0 %v192
    %200 = vmatpush.msra.mxu0 %v191
    %201 = vmatpush.msra.mxu0 %v190
    %202 = vmatpush.msra.mxu0 %v189
    %203 = vmatpush.msra.mxu0 %v188
    %204 = vmatpush.msra.mxu0 %v187
    %205 = vmatpush.msra.mxu0 %v186
    %206 = vmatpush.msra.mxu0 %v185
    %207 = vmatpush.msra.mxu0 %v184
    %208 = vmatpush.msra.mxu0 %v183
    %209 = vmatpush.msra.mxu0 %v182
    %210 = vmatpush.msra.mxu0 %v181
    %211 = vmatpush.msra.mxu0 %v180
    %212 = vmatpush.msra.mxu0 %v179
    %213 = vmatpush.msra.mxu0 %v178
    %214 = vmatmul.f32.gmra.mxu0 %v131
    %v215 = vpop.f32.mrf.mxu0
    %v216 = vadd.f32 %v196, %v215
    %217 = vmatmul.f32.gmra.mxu0 %v134
    %v218 = vpop.f32.mrf.mxu0
    %v219 = vadd.f32 %v196, %v218
    %220 = vmatmul.f32.gmra.mxu0 %v137
    %v221 = vpop.f32.mrf.mxu0
    %v222 = vadd.f32 %v196, %v221
    %223 = vmatmul.f32.gmra.mxu0 %v140
    %v224 = vpop.f32.mrf.mxu0
    %v225 = vadd.f32 %v196, %v224
    %226 = vmatmul.f32.gmra.mxu0 %v143
    %v227 = vpop.f32.mrf.mxu0
    %v228 = vadd.f32 %v196, %v227
    %229 = vmatmul.f32.gmra.mxu0 %v146
    %v230 = vpop.f32.mrf.mxu0
    %v231 = vadd.f32 %v196, %v230
    %232 = vmatmul.f32.gmra.mxu0 %v149
    %v233 = vpop.f32.mrf.mxu0
    %v234 = vadd.f32 %v196, %v233
    %235 = vmatmul.f32.gmra.mxu0 %v152
    %v236 = vpop.f32.mrf.mxu0
    %v237 = vadd.f32 %v196, %v236
    %238 = vmatmul.f32.gmra.mxu0 %v155
    %v239 = vpop.f32.mrf.mxu0
    %v240 = vadd.f32 %v196, %v239
    %241 = vmatmul.f32.gmra.mxu0 %v158
    %v242 = vpop.f32.mrf.mxu0
    %v243 = vadd.f32 %v196, %v242
    %244 = vmatmul.f32.gmra.mxu0 %v161
    %v245 = vpop.f32.mrf.mxu0
    %v246 = vadd.f32 %v196, %v245
    %247 = vmatmul.f32.gmra.mxu0 %v164
    %v248 = vpop.f32.mrf.mxu0
    %v249 = vadd.f32 %v196, %v248
    %250 = vmatmul.f32.gmra.mxu0 %v167
    %v251 = vpop.f32.mrf.mxu0
    %v252 = vadd.f32 %v196, %v251
    %253 = vmatmul.f32.gmra.mxu0 %v170
    %v254 = vpop.f32.mrf.mxu0
    %v255 = vadd.f32 %v196, %v254
    %256 = vmatmul.f32.gmra.mxu0 %v173
    %v257 = vpop.f32.mrf.mxu0
    %v258 = vadd.f32 %v196, %v257
    %259 = vmatmul.f32.gmra.mxu0 %v176
    %v260 = vpop.f32.mrf.mxu0
    %v261 = vadd.f32 %v196, %v260
    %262 = vdwg.mxu0
    %v263 = vmax.f32 %v216, 0.0
    %v264 = vmax.f32 %v219, 0.0
    %v265 = vmax.f32 %v222, 0.0
    %v266 = vmax.f32 %v225, 0.0
    %v267 = vmax.f32 %v228, 0.0
    %v268 = vmax.f32 %v231, 0.0
    %v269 = vmax.f32 %v234, 0.0
    %v270 = vmax.f32 %v237, 0.0
    %v271 = vmax.f32 %v240, 0.0
    %v272 = vmax.f32 %v243, 0.0
    %v273 = vmax.f32 %v246, 0.0
    %v274 = vmax.f32 %v249, 0.0
    %v275 = vmax.f32 %v252, 0.0
    %v276 = vmax.f32 %v255, 0.0
    %v277 = vmax.f32 %v258, 0.0
    %v278 = vmax.f32 %v261, 0.0
    %s279 = scalar_lea.vmem [#allocation7], 128
    %v280 = vld [vmem:[%s279] sm:$0xff]
    %v281 = vld [vmem:[%s279 + $0x8] sm:$0xff]
    %v282 = vld [vmem:[%s279 + $0x10] sm:$0xff]
    %v283 = vld [vmem:[%s279 + $0x18] sm:$0xff]
    %v284 = vld [vmem:[%s279 + $0x20] sm:$0xff]
    %v285 = vld [vmem:[%s279 + $0x28] sm:$0xff]
    %v286 = vld [vmem:[%s279 + $0x30] sm:$0xff]
    %v287 = vld [vmem:[%s279 + $0x38] sm:$0xff]
    %v288 = vld [vmem:[%s279 + $0x40] sm:$0xff]
    %v289 = vld [vmem:[%s279 + $0x48] sm:$0xff]
    %v290 = vld [vmem:[%s279 + $0x50] sm:$0xff]
    %v291 = vld [vmem:[%s279 + $0x58] sm:$0xff]
    %v292 = vld [vmem:[%s279 + $0x60] sm:$0xff]
    %v293 = vld [vmem:[%s279 + $0x68] sm:$0xff]
    %v294 = vld [vmem:[%s279 + $0x70] sm:$0xff]
    %v295 = vld [vmem:[%s279 + $0x78] sm:$0xff]
    %s296 = scalar_lea.vmem %s3, 1
    %v297 = vld [vmem:[%s296] sm:$0x1]
    %v299 = vperm.slane %v297, 0
    %301 = vmatpush.msra.mxu0 %v295
    %302 = vmatpush.msra.mxu0 %v294
    %303 = vmatpush.msra.mxu0 %v293
    %304 = vmatpush.msra.mxu0 %v292
    %305 = vmatpush.msra.mxu0 %v291
    %306 = vmatpush.msra.mxu0 %v290
    %307 = vmatpush.msra.mxu0 %v289
    %308 = vmatpush.msra.mxu0 %v288
    %309 = vmatpush.msra.mxu0 %v287
    %310 = vmatpush.msra.mxu0 %v286
    %311 = vmatpush.msra.mxu0 %v285
    %312 = vmatpush.msra.mxu0 %v284
    %313 = vmatpush.msra.mxu0 %v283
    %314 = vmatpush.msra.mxu0 %v282
    %315 = vmatpush.msra.mxu0 %v281
    %316 = vmatpush.msra.mxu0 %v280
    %317 = vmatmul.f32.gmra.mxu0 %v263
    %v318 = vpop.f32.mrf.mxu0
    %v319 = vadd.f32 %v299, %v318
    %320 = vmatmul.f32.gmra.mxu0 %v264
    %v321 = vpop.f32.mrf.mxu0
    %v322 = vadd.f32 %v299, %v321
    %323 = vmatmul.f32.gmra.mxu0 %v265
    %v324 = vpop.f32.mrf.mxu0
    %v325 = vadd.f32 %v299, %v324
    %326 = vmatmul.f32.gmra.mxu0 %v266
    %v327 = vpop.f32.mrf.mxu0
    %v328 = vadd.f32 %v299, %v327
    %329 = vmatmul.f32.gmra.mxu0 %v267
    %v330 = vpop.f32.mrf.mxu0
    %v331 = vadd.f32 %v299, %v330
    %332 = vmatmul.f32.gmra.mxu0 %v268
    %v333 = vpop.f32.mrf.mxu0
    %v334 = vadd.f32 %v299, %v333
    %335 = vmatmul.f32.gmra.mxu0 %v269
    %v336 = vpop.f32.mrf.mxu0
    %v337 = vadd.f32 %v299, %v336
    %338 = vmatmul.f32.gmra.mxu0 %v270
    %v339 = vpop.f32.mrf.mxu0
    %v340 = vadd.f32 %v299, %v339
    %341 = vmatmul.f32.gmra.mxu0 %v271
    %v342 = vpop.f32.mrf.mxu0
    %v343 = vadd.f32 %v299, %v342
    %344 = vmatmul.f32.gmra.mxu0 %v272
    %v345 = vpop.f32.mrf.mxu0
    %v346 = vadd.f32 %v299, %v345
    %347 = vmatmul.f32.gmra.mxu0 %v273
    %v348 = vpop.f32.mrf.mxu0
    %v349 = vadd.f32 %v299, %v348
    %350 = vmatmul.f32.gmra.mxu0 %v274
    %v351 = vpop.f32.mrf.mxu0
    %v352 = vadd.f32 %v299, %v351
    %353 = vmatmul.f32.gmra.mxu0 %v275
    %v354 = vpop.f32.mrf.mxu0
    %v355 = vadd.f32 %v299, %v354
    %356 = vmatmul.f32.gmra.mxu0 %v276
    %v357 = vpop.f32.mrf.mxu0
    %v358 = vadd.f32 %v299, %v357
    %359 = vmatmul.f32.gmra.mxu0 %v277
    %v360 = vpop.f32.mrf.mxu0
    %v361 = vadd.f32 %v299, %v360
    %362 = vmatmul.f32.gmra.mxu0 %v278
    %v363 = vpop.f32.mrf.mxu0
    %v364 = vadd.f32 %v299, %v363
    %365 = vdwg.mxu0
    %v366 = vmax.f32 %v319, 0.0
    %v367 = vmax.f32 %v322, 0.0
    %v368 = vmax.f32 %v325, 0.0
    %v369 = vmax.f32 %v328, 0.0
    %v370 = vmax.f32 %v331, 0.0
    %v371 = vmax.f32 %v334, 0.0
    %v372 = vmax.f32 %v337, 0.0
    %v373 = vmax.f32 %v340, 0.0
    %v374 = vmax.f32 %v343, 0.0
    %v375 = vmax.f32 %v346, 0.0
    %v376 = vmax.f32 %v349, 0.0
    %v377 = vmax.f32 %v352, 0.0
    %v378 = vmax.f32 %v355, 0.0
    %v379 = vmax.f32 %v358, 0.0
    %v380 = vmax.f32 %v361, 0.0
    %v381 = vmax.f32 %v364, 0.0
    %382 = vst [vmem:[#allocation8] sm:$0xff] %v366
    %383 = vst [vmem:[#allocation8 + $0x8] sm:$0xff] %v367
    %384 = vst [vmem:[#allocation8 + $0x10] sm:$0xff] %v368
    %385 = vst [vmem:[#allocation8 + $0x18] sm:$0xff] %v369
    %386 = vst [vmem:[#allocation8 + $0x20] sm:$0xff] %v370
    %387 = vst [vmem:[#allocation8 + $0x28] sm:$0xff] %v371
    %388 = vst [vmem:[#allocation8 + $0x30] sm:$0xff] %v372
    %389 = vst [vmem:[#allocation8 + $0x38] sm:$0xff] %v373
    %390 = vst [vmem:[#allocation8 + $0x40] sm:$0xff] %v374
    %391 = vst [vmem:[#allocation8 + $0x48] sm:$0xff] %v375
    %392 = vst [vmem:[#allocation8 + $0x50] sm:$0xff] %v376
    %393 = vst [vmem:[#allocation8 + $0x58] sm:$0xff] %v377
    %394 = vst [vmem:[#allocation8 + $0x60] sm:$0xff] %v378
    %395 = vst [vmem:[#allocation8 + $0x68] sm:$0xff] %v379
    %396 = vst [vmem:[#allocation8 + $0x70] sm:$0xff] %v380
    %397 = vst [vmem:[#allocation8 + $0x78] sm:$0xff] %v381
    // Predicated region
    $region30: #{tpu_custom_call.1} parent=1 // pred_check
      _
    $region31: #{tpu_custom_call.1} parent=1 // pred_check_branch
      %399 = sbr.rel (0) target = $region33
    $region32: #{tpu_custom_call.1} parent=1 // pred_region
      %401 = vsyncadd [#allocation4], 0
      %s402 = sshll.u32 [#allocation8], 4
      %s403 = int_to_ptr.vmem [resolvable:$true] %s402
      %s404 = sshll.u32 %s4, 4
      %s405 = int_to_ptr.hbm [resolvable:$true] %s404
      %410 = dma.vmem_to_hbm [thread:$0]  %s403, 2048, %s405, [#allocation4], 128, 128, 8
    $region33: #{tpu_custom_call.1} parent=1 // pred_fallthru
      _
    // Predicated region
    $region34: #{tpu_custom_call.1} parent=1 // pred_check
      _
    $region35: #{tpu_custom_call.1} parent=1 // pred_check_branch
      %412 = sbr.rel (0) target = $region37
    $region36: #{tpu_custom_call.1} parent=1 // pred_region
      %414 = dma.done [#allocation4], 2048
    $region37: #{tpu_custom_call.1} parent=1 // pred_fallthru
      _
    %415 = vsyncpa [#allocation3], 1
    %416 = vsyncpa [#allocation6], 1
    %417 = vsyncpa [#allocation4], 1

</llo_original>
